<compile_context>
chip_gen: v6e
topology: v6e:2x2x1
jax: 0.10.0
libtpu: 0.0.40
codegen_flags: <defaults>
</compile_context>

<pallas_src>
import jax
import jax.numpy as jnp
from jax.experimental import pallas as pl
from jax.experimental.pallas import tpu as pltpu

_TARGET_BLOCK_BYTES = 4 * 1024 * 1024  # ~4 MiB per block (see perf notes above)


def _binarize_kernel(x_ref, o_ref):
    # Exact PyTorch forward semantics: x < 0 -> -1, x >= 0 -> +1, NaN untouched.
    x = x_ref[...]
    pos = jnp.ones_like(x)
    neg = -pos
    o_ref[...] = jnp.where(x < 0, neg, jnp.where(x >= 0, pos, x))


def _round_up(a: int, b: int) -> int:
    return ((a + b - 1) // b) * b


def _sublanes(dtype) -> int:
    # vreg sublane granularity: 8 for 4-byte, 16 for 2-byte, 32 for 1-byte dtypes.
    return max(8, 32 // max(1, jnp.dtype(dtype).itemsize))


def _compiler_params(block_bytes: int) -> pltpu.CompilerParams:
    # Explicit scoped-VMEM limit (~6x one block; actual use is ~4x with
    # double-buffered in+out). Portable across v5e/v6e/v7x default limits and
    # well under v7x's 64 MiB physical VMEM.
    vmem_limit = int(min(max(6 * block_bytes, 8 * 1024 * 1024), 48 * 1024 * 1024))
    return pltpu.CompilerParams(
        dimension_semantics=("parallel",),  # shards the grid over v7x's 2 TCs
        vmem_limit_bytes=vmem_limit,
    )


def _binarize_2d(x2d: jnp.ndarray, *, target_block_bytes: int = _TARGET_BLOCK_BYTES) -> jnp.ndarray:
    """Binarize a lane-dense (rows, cols) slab (cols % 128 == 0)."""
    rows, cols = x2d.shape
    dtype = x2d.dtype
    itemsize = jnp.dtype(dtype).itemsize
    sub = _sublanes(dtype)

    # Row tile sized so one block is ~target_block_bytes.
    tr = max(sub, (target_block_bytes // (cols * itemsize)) // sub * sub)
    # If there is more than ~2 blocks worth of data, ensure >= 4 grid steps so
    # both v7x TensorCores (>= 2 steps each) get work.
    if rows > 2 * tr:
        tr = min(tr, max(sub, _round_up(pl.cdiv(rows, 4), sub)))
    if tr >= rows:
        tr = rows  # single block; full-extent rows dim is always a legal block dim

    block_bytes = tr * cols * itemsize
    nbytes = rows * cols * itemsize

    return pl.pallas_call(
        _binarize_kernel,
        out_shape=jax.ShapeDtypeStruct((rows, cols), dtype),
        grid_spec=pltpu.PrefetchScalarGridSpec(
            num_scalar_prefetch=0,
            grid=(pl.cdiv(rows, tr),),  # ragged last block is masked by Pallas
            in_specs=[pl.BlockSpec((tr, cols), lambda i: (i, 0))],
            out_specs=pl.BlockSpec((tr, cols), lambda i: (i, 0)),
        ),
        compiler_params=_compiler_params(block_bytes),
        cost_estimate=pl.CostEstimate(
            flops=2 * rows * cols, transcendentals=0, bytes_accessed=2 * nbytes
        ),
    )(x2d)


def _binarize_1d(x1d: jnp.ndarray, *, target_block_bytes: int = _TARGET_BLOCK_BYTES) -> jnp.ndarray:
    """Binarize a flat array whose size is not a multiple of 128.

    Single pallas_call with a 1-D block (multiple of 1024 elements) and a cdiv
    grid; the ragged final block is masked by Pallas. No padding, no concat.
    """
    (n,) = x1d.shape
    dtype = x1d.dtype
    itemsize = jnp.dtype(dtype).itemsize

    blk = max(1024, (target_block_bytes // itemsize) // 1024 * 1024)
    if n > 2 * blk:
        blk = min(blk, max(1024, _round_up(pl.cdiv(n, 4), 1024)))
    if blk >= n:
        blk = n  # full-extent block (legal for any size)

    block_bytes = blk * itemsize

    return pl.pallas_call(
        _binarize_kernel,
        out_shape=jax.ShapeDtypeStruct((n,), dtype),
        grid_spec=pltpu.PrefetchScalarGridSpec(
            num_scalar_prefetch=0,
            grid=(pl.cdiv(n, blk),),
            in_specs=[pl.BlockSpec((blk,), lambda i: (i,))],
            out_specs=pl.BlockSpec((blk,), lambda i: (i,)),
        ),
        compiler_params=_compiler_params(block_bytes),
        cost_estimate=pl.CostEstimate(
            flops=2 * n, transcendentals=0, bytes_accessed=2 * n * itemsize
        ),
    )(x1d)


def binarize(x: jnp.ndarray) -> jnp.ndarray:
    """Elementwise binarize of an arbitrarily-shaped array via a Pallas kernel."""
    orig_shape = x.shape
    dtype = x.dtype
    if jnp.issubdtype(dtype, jnp.unsignedinteger) or dtype == jnp.bool_:
        raise ValueError(
            "binarize: unsigned/bool dtypes cannot represent -1; "
            "use a floating-point or signed-integer dtype."
        )
    n = x.size
    if n == 0:
        return x

    x_flat = jnp.ravel(x)  # metadata-only for a contiguous row-major array

    # Widest lane-dense slab width that divides n exactly -> zero wrapper copies.
    cols = 0
    for c in (2048, 1024, 512, 256, 128):
        if n % c == 0:
            cols = c
            break

    if cols:
        out_flat = _binarize_2d(x_flat.reshape(n // cols, cols)).reshape(-1)
    else:
        out_flat = _binarize_1d(x_flat)

    return out_flat.reshape(orig_shape)


# TODO(synk): backward pass (straight-through gradient zeroed where |x| > 1) is
# autograd machinery and is not implemented here (forward-only kernel).


if __name__ == "__main__":
    def ref_binarize(v):
        one = jnp.ones_like(v)
        return jnp.where(v < 0, -one, jnp.where(v >= 0, one, v))

    key = jax.random.PRNGKey(0)
    k0, k1, k2, k3 = jax.random.split(key, 4)

    # Small NCHW input consistent with a conv-style activation tensor.
    x = jax.random.normal(k0, (2, 4, 16, 16), dtype=jnp.float32) * 2.0
    out = jax.block_until_ready(binarize(x))
    assert out.shape == x.shape and out.dtype == x.dtype
    assert bool(jnp.all(out == ref_binarize(x)))
    assert bool(jnp.all(jnp.abs(out) == 1.0))

    # bf16 (16-sublane path).
    xb = x.astype(jnp.bfloat16)
    outb = jax.block_until_ready(binarize(xb))
    assert outb.dtype == jnp.bfloat16
    assert bool(jnp.all(outb == ref_binarize(xb)))

    # Flat size is a multiple of 128 but not 256 -> narrow-cols 2-D path.
    xr = jax.random.normal(k1, (2, 4, 16, 17), dtype=jnp.float32)
    outr = jax.block_until_ready(binarize(xr))
    assert bool(jnp.all(outr == ref_binarize(xr)))

    # Truly ragged total size (105 elements, not a multiple of 128) -> 1-D path.
    xt = jax.random.normal(k2, (3, 5, 7), dtype=jnp.float32)
    outt = jax.block_until_ready(binarize(xt))
    assert outt.shape == xt.shape and outt.dtype == xt.dtype
    assert bool(jnp.all(outt == ref_binarize(xt)))

    # Signed integer dtype.
    xi = jax.random.randint(k3, (8, 128), -5, 6, dtype=jnp.int32)
    outi = jax.block_until_ready(binarize(xi))
    assert outi.dtype == jnp.int32
    assert bool(jnp.all(outi == ref_binarize(xi)))

    # NaN elements are left untouched, exactly like the PyTorch forward.
    xn = jax.random.normal(k0, (8, 128), dtype=jnp.float32)
    xn = xn.at[0, 0].set(jnp.nan).at[3, 77].set(jnp.nan)
    outn = jax.block_until_ready(binarize(xn))
    assert bool(jnp.isnan(outn[0, 0])) and bool(jnp.isnan(outn[3, 77]))
    ok_non_nan = jnp.where(~jnp.isnan(xn), outn == ref_binarize(xn), True)
    assert bool(jnp.all(ok_non_nan))

    print("KERNEL_OK")
</pallas_src>

<mosaic_0001>
module attributes {stable_mosaic.version = 11 : i64} {
  func.func @_binarize_kernel(%arg0: i32, %arg1: memref<1x2048xf32, #tpu.memory_space<vmem>>, %arg2: memref<1x2048xf32, #tpu.memory_space<vmem>>) attributes {dimension_semantics = [#tpu.dimension_semantics<parallel>], iteration_bounds = array<i64: 1>, scalar_prefetch = 0 : i64, scratch_operands = 0 : i64, tpu.core_type = #tpu.core_type<tc>, window_params = [{transform_indices = @transform_0, window_bounds = array<i64: 1, 2048>}, {transform_indices = @transform_1, window_bounds = array<i64: 1, 2048>}]} {
    %c0 = arith.constant 0 : index
    %c0_0 = arith.constant 0 : index
    %0 = vector.load %arg1[%c0, %c0_0] : memref<1x2048xf32, #tpu.memory_space<vmem>>, vector<1x2048xf32>
    %cst = arith.constant 1.000000e+00 : f32
    %1 = vector.broadcast %cst : f32 to vector<1x2048xf32>
    %cst_1 = arith.constant 0.000000e+00 : f32
    %2 = vector.broadcast %cst_1 : f32 to vector<1x2048xf32>
    %3 = arith.subf %2, %1 : vector<1x2048xf32>
    %cst_2 = arith.constant 0.000000e+00 : f32
    %4 = vector.broadcast %cst_2 : f32 to vector<1x2048xf32>
    %5 = arith.cmpf olt, %0, %4 : vector<1x2048xf32>
    %cst_3 = arith.constant 0.000000e+00 : f32
    %6 = vector.broadcast %cst_3 : f32 to vector<1x2048xf32>
    %7 = arith.cmpf oge, %0, %6 : vector<1x2048xf32>
    %8 = arith.select %7, %1, %0 : vector<1x2048xi1>, vector<1x2048xf32>
    %9 = arith.select %5, %3, %8 : vector<1x2048xi1>, vector<1x2048xf32>
    %c0_4 = arith.constant 0 : index
    %c0_5 = arith.constant 0 : index
    %10 = vector.load %arg2[%c0_4, %c0_5] : memref<1x2048xf32, #tpu.memory_space<vmem>>, vector<1x2048xf32>
    tpu.vector_store %arg2[%c0_4, %c0_5], %9 {strides = array<i32>} : memref<1x2048xf32, #tpu.memory_space<vmem>>, vector<1x2048xf32>,
    return
  }
  func.func @transform_0(%arg0: i32) -> (i32, i32) {
    %c0_i32 = arith.constant 0 : i32
    %c0_i32_0 = arith.constant 0 : i32
    return %arg0, %c0_i32 : i32, i32
  }
  func.func @transform_1(%arg0: i32) -> (i32, i32) {
    %c0_i32 = arith.constant 0 : i32
    %c0_i32_0 = arith.constant 0 : i32
    return %arg0, %c0_i32 : i32, i32
  }
}

</mosaic_0001>

<llo_original>
// kernel: tpu_custom_call.1
$region0: #{tpu_custom_call.1}
  #allocation0 [shape = 'u32[]', space=smem, size = 0x4, offset = 0x4, fixed_abs, tag = 'smem constant byte address 0x4 - core index']
  #allocation1 [shape = 'u32[144,128]{1,0:T(1,128)}', space=vmem, size = 0x12000, scoped, tag = 'internal scratch']
  %s0 = inlined_call_operand.hbm [shape: f32[1,2048], index: 0, kind: input, shape index: {}]
  %s1 = inlined_call_operand.hbm [shape: f32[1,2048], index: 1, kind: output, shape index: {}]
  %s2 = sld [smem:[#allocation0]]
  $region18: #{tpu_custom_call.1} parent=0
    _
  %s4 = ssub.s32 1, %s2
  %s5 = scalar_select 0, %s4, %s2
  $region1: #{tpu_custom_call.1} parent=0
    #allocation2 [shape = 'u8[8192]{0}', space=vmem, size = 0x2000, scoped, tag = 'input window, operand 0, single buffered']
    #allocation3 [shape = 's32[1]{0}', space=sflag, size = 0x4, scoped, tag = 'scoped memory for tpu_custom_call.1']
    #allocation4 [shape = 's32[1]{0}', space=sflag, size = 0x4, scoped, tag = 'scoped memory for tpu_custom_call.1']
    #allocation5 [shape = 'u8[8192]{0}', space=vmem, size = 0x2000, scoped, tag = 'output window, operand 0, single buffered']
    %6 = vsyncpa [#allocation3], 0
    %7 = vsyncpa [#allocation4], 0
    // Predicated region
    $region2: #{tpu_custom_call.1} parent=1 // pred_check
      _
    $region3: #{tpu_custom_call.1} parent=1 // pred_check_branch
      %9 = sbr.rel (0) target = $region5
    $region4: #{tpu_custom_call.1} parent=1 // pred_region
      %s11 = ssub.s32 256, 256
      %12 = vsyncadd [#allocation3], %s11
      %s14 = sshll.u32 [#allocation2], 4
      %s15 = int_to_ptr.vmem [resolvable:$true] %s14
      %17 = dma.hbm_to_vmem [thread:$0]  %s0, 256, %s15, [#allocation3]
    $region5: #{tpu_custom_call.1} parent=1 // pred_fallthru
      _
    // Predicated region
    $region6: #{tpu_custom_call.1} parent=1 // pred_check
      _
    $region7: #{tpu_custom_call.1} parent=1 // pred_check_branch
      %19 = sbr.rel (0) target = $region9
    $region8: #{tpu_custom_call.1} parent=1 // pred_region
      %20 = dma.done [#allocation3], 256
    $region9: #{tpu_custom_call.1} parent=1 // pred_fallthru
      _
    %v21 = vld [vmem:[#allocation2] sm:$0xff]
    %v22 = vld [vmem:[#allocation2 + $0x8] sm:$0xff]
    %vm23 = vcmp.lt.f32.partialorder %v21, 0.0
    %vm24 = vcmp.lt.f32.partialorder %v22, 0.0
    %vm25 = vcmp.ge.f32.partialorder %v21, 0.0
    %vm26 = vcmp.ge.f32.partialorder %v22, 0.0
    %v27 = vsel %vm25, 1.0, %v21
    %v28 = vsel %vm26, 1.0, %v22
    %v29 = vsel %vm23, -1.0, %v27
    %v30 = vsel %vm24, -1.0, %v28
    %31 = vst [vmem:[#allocation5] sm:$0xff] %v29
    %32 = vst [vmem:[#allocation5 + $0x8] sm:$0xff] %v30
    // Predicated region
    $region10: #{tpu_custom_call.1} parent=1 // pred_check
      _
    $region11: #{tpu_custom_call.1} parent=1 // pred_check_branch
      %34 = sbr.rel (0) target = $region13
    $region12: #{tpu_custom_call.1} parent=1 // pred_region
      %s36 = ssub.s32 256, 256
      %37 = vsyncadd [#allocation4], %s36
      %s39 = sshll.u32 [#allocation5], 4
      %s40 = int_to_ptr.vmem [resolvable:$true] %s39
      %42 = dma.vmem_to_hbm [thread:$0]  %s40, 256, %s1, [#allocation4]
    $region13: #{tpu_custom_call.1} parent=1 // pred_fallthru
      _
    // Predicated region
    $region14: #{tpu_custom_call.1} parent=1 // pred_check
      _
    $region15: #{tpu_custom_call.1} parent=1 // pred_check_branch
      %44 = sbr.rel (0) target = $region17
    $region16: #{tpu_custom_call.1} parent=1 // pred_region
      %45 = dma.done [#allocation4], 256
    $region17: #{tpu_custom_call.1} parent=1 // pred_fallthru
      _
    %46 = vsyncpa [#allocation3], 1
    %47 = vsyncpa [#allocation4], 1

</llo_original>
